<compile_context>
chip_gen: v7x
topology: tpu7x:2x2x1
jax: 0.10.0
libtpu: 0.0.40
codegen_flags: <defaults>
</compile_context>

<pallas_src>
import functools

import jax
import jax.numpy as jnp
from jax import lax
from jax.experimental import pallas as pl
from jax.experimental.pallas import tpu as pltpu


def _round_up(n, m):
    return ((n + m - 1) // m) * m


def _cond_entropy_kernel(x_ref, o_ref, *, tb, batch):
    c = pl.program_id(0)          # core-split index ("parallel")
    i = pl.program_id(1)          # reduction step within the split ("arbitrary")
    n_i = pl.num_programs(1)

    # Zero this split's resident accumulator block on its first step.
    @pl.when(i == 0)
    def _():
        o_ref[...] = jnp.zeros_like(o_ref)

    x_raw = x_ref[...]                                        # (tb, C), input dtype
    # Row max is exact in the input dtype (bf16 stays packed on v6e/v7x).
    m = jnp.max(x_raw, axis=1, keepdims=True).astype(jnp.float32)   # (tb, 1)
    x = x_raw.astype(jnp.float32)                             # (tb, C)

    # Numerically-stable rewrite:
    #   sum_c p*logp = sum_c(ex*shifted)/denom - log(denom)
    shifted = x - m                                           # (tb, C)
    ex = jnp.exp(shifted)                                     # (tb, C)  EUP
    denom = jnp.sum(ex, axis=1, keepdims=True)                # (tb, 1)
    s1 = jnp.sum(ex * shifted, axis=1, keepdims=True)         # (tb, 1)
    per_row = s1 / denom - jnp.log(denom)                     # exact reciprocal

    # Mask rows past the true batch size.  The last block of each split may be
    # partial (no wrapper padding) and duplicated tail blocks are clamped by
    # the index_map, so their garbage rows must not contribute.  This is a
    # select, not a multiply, so NaN/Inf garbage never propagates.
    row_start = (c * n_i + i) * tb
    rows = row_start + lax.broadcasted_iota(jnp.int32, (tb, 1), 0)
    per_row = jnp.where(rows < batch, per_row, 0.0)

    # Accumulate the tile's partial sum (scalar broadcast over the (1,8,128)
    # accumulator block; every element of the block holds the same value).
    o_ref[...] += jnp.sum(per_row)

    # Finalize this split: negate and divide by the true batch size.
    @pl.when(i == n_i - 1)
    def _():
        o_ref[...] = o_ref[...] * (-1.0 / batch)


def conditional_entropy_loss(x, *, num_core_splits=2,
                             vmem_budget_bytes=24 << 20, tile_rows=None):
    """x: (B, C) logits (any float dtype). Returns scalar f32 loss matching the
    PyTorch module's semantics for a 2-D input."""
    assert x.ndim == 2, "ConditionalEntropyLoss kernel supports 2-D (B, C) input only"
    B, C = x.shape
    itemsize = jnp.dtype(x.dtype).itemsize
    row_mult = max(8, 32 // max(1, itemsize))      # 8 for f32, 16 for bf16

    # ---- Byte-budgeted batch tile ---------------------------------------
    if tile_rows is not None:                       # test hook: force small tiles
        tb = max(row_mult, _round_up(tile_rows, row_mult))
    else:
        # 2x input (double-buffered DMA) + ~6x f32 intermediates per row.
        bytes_per_row = C * (2 * itemsize + 6 * 4)
        tb = (vmem_budget_bytes // bytes_per_row) // row_mult * row_mult
        tb = max(row_mult, min(tb, 4096))
    # Never larger than one core-split actually needs.
    rows_per_split = pl.cdiv(B, max(1, num_core_splits))
    tb = max(row_mult, min(tb, _round_up(rows_per_split, row_mult)))

    total_blocks = pl.cdiv(B, tb)
    splits = max(1, min(num_core_splits, total_blocks))
    steps = pl.cdiv(total_blocks, splits)
    last_block = total_blocks - 1

    def x_map(c, i):
        # Clamp duplicated tail blocks in-bounds; the in-kernel row mask zeroes
        # their contribution (logical rows are >= B there).
        return (jnp.minimum(c * steps + i, last_block), 0)

    kernel = functools.partial(_cond_entropy_kernel, tb=tb, batch=B)

    in_bytes = 2 * tb * C * itemsize                # double-buffered input DMA
    f32_tmp = 6 * tb * C * 4                        # headroom for f32 temps
    vmem_limit = int(min(60 << 20, max(in_bytes + f32_tmp + (2 << 20), 16 << 20)))

    out = pl.pallas_call(
        kernel,
        out_shape=jax.ShapeDtypeStruct((splits, 8, 128), jnp.float32),
        grid=(splits, steps),
        in_specs=[pl.BlockSpec((tb, C), x_map)],
        out_specs=pl.BlockSpec((1, 8, 128), lambda c, i: (c, 0, 0)),
        compiler_params=pltpu.CompilerParams(
            dimension_semantics=("parallel", "arbitrary"),
            vmem_limit_bytes=vmem_limit,
        ),
    )(x)
    # Each split's block holds its (already -1/B scaled) partial, replicated.
    return jnp.sum(out[:, 0, 0])


def _reference(x):
    xf = x.astype(jnp.float32)
    logp = jax.nn.log_softmax(xf, axis=1)
    p = jax.nn.softmax(xf, axis=1)
    b = jnp.sum(p * logp, axis=1)
    return -1.0 * jnp.mean(b, axis=0)


if __name__ == "__main__":
    key = jax.random.PRNGKey(0)
    k1, k2, k3 = jax.random.split(key, 3)

    # Test 1: small f32 logits, single tile / single split.
    x1 = jax.random.normal(k1, (8, 32), dtype=jnp.float32)
    loss1 = jax.block_until_ready(conditional_entropy_loss(x1))
    ref1 = jax.block_until_ready(_reference(x1))
    assert jnp.allclose(loss1, ref1, atol=1e-5, rtol=1e-5), (loss1, ref1)

    # Test 2: ragged batch, no wrapper padding; small forced tile exercises the
    # multi-step accumulator, the 2-way split, the clamped duplicate tail block
    # and the partial-block row mask.
    x2 = 3.0 * jax.random.normal(k2, (100, 32), dtype=jnp.float32)
    loss2 = jax.block_until_ready(conditional_entropy_loss(x2, tile_rows=16))
    ref2 = jax.block_until_ready(_reference(x2))
    assert jnp.allclose(loss2, ref2, atol=1e-5, rtol=1e-5), (loss2, ref2)

    # Test 3: bf16 logits stay bf16 over HBM; row max in bf16, compute in f32.
    x3 = jax.random.normal(k3, (16, 32), dtype=jnp.bfloat16)
    loss3 = jax.block_until_ready(conditional_entropy_loss(x3))
    ref3 = jax.block_until_ready(_reference(x3))
    assert jnp.allclose(loss3, ref3, atol=1e-3, rtol=1e-3), (loss3, ref3)

    print("KERNEL_OK")
</pallas_src>

<mosaic_0001>
module attributes {stable_mosaic.version = 11 : i64} {
  func.func @_cond_entropy_kernel(%arg0: i32, %arg1: i32, %arg2: memref<8x32xf32, #tpu.memory_space<vmem>>, %arg3: memref<1x8x128xf32, #tpu.memory_space<vmem>>) attributes {dimension_semantics = [#tpu.dimension_semantics<parallel>, #tpu.dimension_semantics<arbitrary>], iteration_bounds = array<i64: 1, 1>, scalar_prefetch = 0 : i64, scratch_operands = 0 : i64, tpu.core_type = #tpu.core_type<tc>, window_params = [{transform_indices = @transform_0, window_bounds = array<i64: 8, 32>}, {transform_indices = @transform_1, window_bounds = array<i64: 1, 8, 128>}]} {
    %c0_i32 = arith.constant 0 : i32
    %0 = arith.cmpi eq, %arg1, %c0_i32 : i32
    %1 = arith.extui %0 : i1 to i32
    %c0_i32_0 = arith.constant 0 : i32
    %2 = arith.cmpi ne, %1, %c0_i32_0 : i32
    scf.if %2 {
      %cst_15 = arith.constant 0.000000e+00 : f32
      %38 = vector.broadcast %cst_15 : f32 to vector<1x8x128xf32>
      %c0_16 = arith.constant 0 : index
      %c0_17 = arith.constant 0 : index
      %c0_18 = arith.constant 0 : index
      %39 = vector.load %arg3[%c0_16, %c0_17, %c0_18] : memref<1x8x128xf32, #tpu.memory_space<vmem>>, vector<1x8x128xf32>
      tpu.vector_store %arg3[%c0_16, %c0_17, %c0_18], %38 {strides = array<i32>} : memref<1x8x128xf32, #tpu.memory_space<vmem>>, vector<1x8x128xf32>,
    } else {
    }
    %c0 = arith.constant 0 : index
    %c0_1 = arith.constant 0 : index
    %3 = vector.load %arg2[%c0, %c0_1] : memref<8x32xf32, #tpu.memory_space<vmem>>, vector<8x32xf32>
    %cst = arith.constant dense<0xFF800000> : vector<8xf32>
    %4 = vector.multi_reduction <maximumf>, %3, %cst [1] : vector<8x32xf32> to vector<8xf32>
    %5 = vector.shape_cast %4 : vector<8xf32> to vector<8x1xf32>
    %6 = vector.broadcast %5 : vector<8x1xf32> to vector<8x32xf32>
    %7 = arith.subf %3, %6 : vector<8x32xf32>
    %8 = math.exp %7 : vector<8x32xf32>
    %cst_2 = arith.constant dense<0.000000e+00> : vector<8xf32>
    %9 = vector.multi_reduction <add>, %8, %cst_2 [1] : vector<8x32xf32> to vector<8xf32>
    %10 = vector.shape_cast %9 : vector<8xf32> to vector<8x1xf32>
    %11 = arith.mulf %8, %7 : vector<8x32xf32>
    %cst_3 = arith.constant dense<0.000000e+00> : vector<8xf32>
    %12 = vector.multi_reduction <add>, %11, %cst_3 [1] : vector<8x32xf32> to vector<8xf32>
    %13 = vector.shape_cast %12 : vector<8xf32> to vector<8x1xf32>
    %14 = arith.divf %13, %10 : vector<8x1xf32>
    %15 = math.log %10 : vector<8x1xf32>
    %16 = arith.subf %14, %15 : vector<8x1xf32>
    %c1_i32 = arith.constant 1 : i32
    %17 = arith.muli %arg0, %c1_i32 : i32
    %18 = arith.addi %17, %arg1 : i32
    %c8_i32 = arith.constant 8 : i32
    %19 = arith.muli %18, %c8_i32 : i32
    %20 = tpu.iota {dimensions = array<i32: 0>} : vector<8x1xi32>
    %21 = vector.broadcast %19 : i32 to vector<8x1xi32>
    %22 = arith.addi %21, %20 : vector<8x1xi32>
    %c8_i32_4 = arith.constant 8 : i32
    %23 = vector.broadcast %c8_i32_4 : i32 to vector<8x1xi32>
    %24 = arith.cmpi slt, %22, %23 : vector<8x1xi32>
    %cst_5 = arith.constant 0.000000e+00 : f32
    %25 = vector.broadcast %cst_5 : f32 to vector<8x1xf32>
    %26 = arith.select %24, %16, %25 : vector<8x1xi1>, vector<8x1xf32>
    %c0_6 = arith.constant 0 : index
    %c0_7 = arith.constant 0 : index
    %c0_8 = arith.constant 0 : index
    %27 = vector.load %arg3[%c0_6, %c0_7, %c0_8] : memref<1x8x128xf32, #tpu.memory_space<vmem>>, vector<1x8x128xf32>
    %28 = vector.shape_cast %26 : vector<8x1xf32> to vector<1x8x1xf32>
    %cst_9 = arith.constant dense<0.000000e+00> : vector<1xf32>
    %29 = vector.multi_reduction <add>, %28, %cst_9 [1, 2] : vector<1x8x1xf32> to vector<1xf32>
    %30 = vector.shape_cast %29 : vector<1xf32> to vector<1x1x1xf32>
    %31 = vector.extract %30[0, 0, 0] : f32 from vector<1x1x1xf32>
    %32 = vector.broadcast %31 : f32 to vector<1x8x128xf32>
    %33 = arith.addf %27, %32 : vector<1x8x128xf32>
    %c0_10 = arith.constant 0 : index
    %c0_11 = arith.constant 0 : index
    %c0_12 = arith.constant 0 : index
    %34 = vector.load %arg3[%c0_10, %c0_11, %c0_12] : memref<1x8x128xf32, #tpu.memory_space<vmem>>, vector<1x8x128xf32>
    tpu.vector_store %arg3[%c0_10, %c0_11, %c0_12], %33 {strides = array<i32>} : memref<1x8x128xf32, #tpu.memory_space<vmem>>, vector<1x8x128xf32>,
    %c0_i32_13 = arith.constant 0 : i32
    %35 = arith.cmpi eq, %arg1, %c0_i32_13 : i32
    %36 = arith.extui %35 : i1 to i32
    %c0_i32_14 = arith.constant 0 : i32
    %37 = arith.cmpi ne, %36, %c0_i32_14 : i32
    scf.if %37 {
      %c0_15 = arith.constant 0 : index
      %c0_16 = arith.constant 0 : index
      %c0_17 = arith.constant 0 : index
      %38 = vector.load %arg3[%c0_15, %c0_16, %c0_17] : memref<1x8x128xf32, #tpu.memory_space<vmem>>, vector<1x8x128xf32>
      %cst_18 = arith.constant -1.250000e-01 : f32
      %39 = vector.broadcast %cst_18 : f32 to vector<1x8x128xf32>
      %40 = arith.mulf %38, %39 : vector<1x8x128xf32>
      %c0_19 = arith.constant 0 : index
      %c0_20 = arith.constant 0 : index
      %c0_21 = arith.constant 0 : index
      %41 = vector.load %arg3[%c0_19, %c0_20, %c0_21] : memref<1x8x128xf32, #tpu.memory_space<vmem>>, vector<1x8x128xf32>
      tpu.vector_store %arg3[%c0_19, %c0_20, %c0_21], %40 {strides = array<i32>} : memref<1x8x128xf32, #tpu.memory_space<vmem>>, vector<1x8x128xf32>,
    } else {
    }
    return
  }
  func.func @transform_0(%arg0: i32, %arg1: i32) -> (i32, i32) {
    %c1_i32 = arith.constant 1 : i32
    %0 = arith.muli %arg0, %c1_i32 : i32
    %1 = arith.addi %0, %arg1 : i32
    %c0_i32 = arith.constant 0 : i32
    %2 = arith.minsi %1, %c0_i32 : i32
    %c0_i32_0 = arith.constant 0 : i32
    %c0_i32_1 = arith.constant 0 : i32
    return %2, %c0_i32_0 : i32, i32
  }
  func.func @transform_1(%arg0: i32, %arg1: i32) -> (i32, i32, i32) {
    %c0_i32 = arith.constant 0 : i32
    %c0_i32_0 = arith.constant 0 : i32
    %c0_i32_1 = arith.constant 0 : i32
    return %arg0, %c0_i32, %c0_i32_0 : i32, i32, i32
  }
}

</mosaic_0001>

<llo_original>
// kernel: tpu_custom_call.1
$region0: #{tpu_custom_call.1}
  #allocation0 [shape = 'u32[]', space=smem, size = 0x4, offset = 0x4, fixed_abs, tag = 'smem constant byte address 0x4 - core index']
  #allocation1 [shape = 'u32[144,128]{1,0:T(1,128)}', space=vmem, size = 0x12000, scoped, tag = 'internal scratch']
  %s0 = inlined_call_operand.hbm [shape: f32[8,32], index: 0, kind: input, shape index: {}]
  %s1 = inlined_call_operand.hbm [shape: f32[1,8,128], index: 1, kind: output, shape index: {}]
  %s2 = sld [smem:[#allocation0]]
  $region26: #{tpu_custom_call.1} parent=0
    _
  %s4 = ssub.s32 1, %s2
  %s5 = scalar_select 0, %s4, %s2
  $region1: #{tpu_custom_call.1} parent=0
    #allocation2 [shape = 'u8[4096]{0}', space=vmem, size = 0x1000, scoped, tag = 'input window, operand 0, single buffered']
    #allocation3 [shape = 's32[1]{0}', space=sflag, size = 0x4, scoped, tag = 'scoped memory for tpu_custom_call.1']
    #allocation4 [shape = 's32[1]{0}', space=sflag, size = 0x4, scoped, tag = 'scoped memory for tpu_custom_call.1']
    #allocation5 [shape = 'u8[4096]{0}', space=vmem, size = 0x1000, scoped, tag = 'output window, operand 0, single buffered']
    %6 = vsyncpa [#allocation3], 0
    %7 = vsyncpa [#allocation4], 0
    // Predicated region
    $region2: #{tpu_custom_call.1} parent=1 // pred_check
      _
    $region3: #{tpu_custom_call.1} parent=1 // pred_check_branch
      %9 = sbr.rel (0) target = $region5
    $region4: #{tpu_custom_call.1} parent=1 // pred_region
      %s10 = sadd.s32 0, 0
      %p11 = scmp.lt.s32.totalorder %s10, 0
      %s12 = scalar_select %p11, %s10, 0
      %s14 = ssub.s32 128, 128
      %15 = vsyncadd [#allocation3], %s14
      %s16 = smul.addr %s12, 128
      %s17 = scalar_lea.hbm %s0, %s16
      %s19 = sshll.u32 [#allocation2], 4
      %s20 = int_to_ptr.vmem [resolvable:$true] %s19
      %22 = dma.hbm_to_vmem [thread:$0]  %s17, 128, %s20, [#allocation3]
    $region5: #{tpu_custom_call.1} parent=1 // pred_fallthru
      _
    // Predicated region
    $region6: #{tpu_custom_call.1} parent=1 // pred_check
      _
    $region7: #{tpu_custom_call.1} parent=1 // pred_check_branch
      %24 = sbr.rel (0) target = $region9
    $region8: #{tpu_custom_call.1} parent=1 // pred_region
      %25 = dma.done [#allocation3], 128
    $region9: #{tpu_custom_call.1} parent=1 // pred_fallthru
      _
    %s26 = sadd.s32 0, 0
    %p27 = scmp.lt.s32.totalorder %s26, 0
    %s28 = scalar_select %p27, %s26, 0
    %p29 = scmp.eq.s32.totalorder 0, 0
    // Predicated region
    $region10: #{tpu_custom_call.1} parent=1 // pred_check
      %p30 = pneg %p29
    $region11: #{tpu_custom_call.1} parent=1 // pred_check_branch
      %32 = sbr.rel (%p30) target = $region13
    $region12: #{tpu_custom_call.1} parent=1 // pred_region
      %33 = vst [vmem:[#allocation5] sm:$0xff] 0.0
    $region13: #{tpu_custom_call.1} parent=1 // pred_fallthru
      _
    %v34 = vld [vmem:[#allocation2] sm:$0xff]
    %vm35 = vcmask 261120
    %v36 = vsel %vm35, %v34, -inf
    %37 = vmax.xlane.f32.xlu0 %v36
    %v38 = vpop.xlane.xlu0 %37
    %v39 = vsub.f32 %v34, %v38
    %v40 = vmul.f32 %v39, 1.442695
    %v41 = vpow.pop %v40
    %v42 = vsel %vm35, %v41, 0.0
    %43 = vadd.xlane.f32.xlu0 %v42
    %v44 = vpop.xlane.xlu0 %43
    %v45 = vmul.f32 %v41, %v39
    %v46 = vsel %vm35, %v45, 0.0
    %47 = vadd.xlane.f32.xlu0 %v46
    %v48 = vpop.xlane.xlu0 %47
    %v49 = vrcp.pop %v44
    %v50 = vmul.f32 %v48, %v49
    %v51 = vlog2.pop %v44
    %v52 = vmul.f32 %v51, 0.6931472
    %v53 = vsub.f32 %v50, %v52
    %s54 = sadd.s32 0, 0
    %s55 = smul.u32 %s54, 8
    %v56 = vlaneseq
    %v57 = vshrl.u32 %v56, 7
    %v58 = vstv %s55
    %v59 = vadd.s32 %v58, %v57
    %vm60 = vcmp.lt.s32.totalorder %v59, 8
    %v61 = vsel %vm60, %v53, 0.0
    %v62 = vld [vmem:[#allocation5] sm:$0xff]
    %vm63 = vcmask 7168
    %v64 = vsel %vm63, %v61, 0.0
    %65 = vadd.xlane.f32.xlu0 %v64
    %v66 = vpop.xlane.xlu0 %65
    %v67 = vrot.slane %v66, 4
    %v68 = vadd.f32 %v66, %v67
    %v69 = vrot.slane %v68, 2
    %v70 = vadd.f32 %v68, %v69
    %v71 = vrot.slane %v70, 1
    %v72 = vadd.f32 %v70, %v71
    %s73 = vtos %v72
    %v74 = vstv %s73
    %v75 = vadd.f32 %v62, %v74
    %76 = vst [vmem:[#allocation5] sm:$0xff] %v75
    // Predicated region
    $region14: #{tpu_custom_call.1} parent=1 // pred_check
      %p77 = pneg %p29
    $region15: #{tpu_custom_call.1} parent=1 // pred_check_branch
      %79 = sbr.rel (%p77) target = $region17
    $region16: #{tpu_custom_call.1} parent=1 // pred_region
      %v80 = vld [vmem:[#allocation5] sm:$0xff]
      %v81 = vmul.f32 %v80, -0.125
      %82 = vst [vmem:[#allocation5] sm:$0xff] %v81
    $region17: #{tpu_custom_call.1} parent=1 // pred_fallthru
      _
    // Predicated region
    $region18: #{tpu_custom_call.1} parent=1 // pred_check
      _
    $region19: #{tpu_custom_call.1} parent=1 // pred_check_branch
      %84 = sbr.rel (0) target = $region21
    $region20: #{tpu_custom_call.1} parent=1 // pred_region
      %s86 = ssub.s32 128, 128
      %87 = vsyncadd [#allocation4], %s86
      %s89 = sshll.u32 [#allocation5], 4
      %s90 = int_to_ptr.vmem [resolvable:$true] %s89
      %92 = dma.vmem_to_hbm [thread:$0]  %s90, 128, %s1, [#allocation4]
    $region21: #{tpu_custom_call.1} parent=1 // pred_fallthru
      _
    // Predicated region
    $region22: #{tpu_custom_call.1} parent=1 // pred_check
      _
    $region23: #{tpu_custom_call.1} parent=1 // pred_check_branch
      %94 = sbr.rel (0) target = $region25
    $region24: #{tpu_custom_call.1} parent=1 // pred_region
      %95 = dma.done [#allocation4], 128
    $region25: #{tpu_custom_call.1} parent=1 // pred_fallthru
      _
    %96 = vsyncpa [#allocation3], 1
    %97 = vsyncpa [#allocation4], 1

</llo_original>
